<compile_context>
chip_gen: v7x
topology: tpu7x:2x2x1
jax: 0.10.0
libtpu: 0.0.40
codegen_flags: <defaults>
</compile_context>

<pallas_src>
import jax
import jax.numpy as jnp
from jax.experimental import pallas as pl
from jax.experimental.pallas import tpu as pltpu

MIB = 1024 * 1024


def mlp_kernel(x_ref, w1_ref, b1_ref, w2_ref, b2_ref, o_ref):
    # linear1: x [tn, D_in] @ W1 [D_in, H] -> [tn, H], f32 accumulate on MXU.
    x = x_ref[...].astype(w1_ref.dtype)                       # bf16 MXU operand
    h = jnp.dot(x, w1_ref[...], preferred_element_type=jnp.float32)
    h = jnp.maximum(h + b1_ref[...], 0.0)                     # bias + ReLU in f32

    # linear2: h [tn, H] @ W2 [H, D_out] -> [tn, D_out], f32 accumulate.
    y = jnp.dot(h.astype(w2_ref.dtype), w2_ref[...],
                preferred_element_type=jnp.float32)
    o_ref[...] = (y + b2_ref[...]).astype(o_ref.dtype)


def prepare_params(w1, b1, w2, b2, *, mxu_dtype=jnp.bfloat16):
    """One-time prep (outside the hot path).

    torch.nn.Linear stores weights as [out_features, in_features]; transpose
    once to the MXU-native [K, N] layout and cast to bf16.  Biases stay f32
    (epilogue runs on the f32 accumulator) and become broadcastable rows.
    """
    return {
        "w1": jnp.asarray(w1).T.astype(mxu_dtype),        # [D_in, H]
        "b1": jnp.asarray(b1).reshape(1, -1).astype(jnp.float32),
        "w2": jnp.asarray(w2).T.astype(mxu_dtype),        # [H, D_out]
        "b2": jnp.asarray(b2).reshape(1, -1).astype(jnp.float32),
    }


def _row_tile(N, tile_n):
    """Largest multiple-of-8 divisor of N that is <= tile_n, preferring a
    grid of >=2 steps (so v7x's 2 TensorCores both get work).  Falls back to
    a single full block for tiny/awkward N.  (For very large awkward N, pad
    the rows once at the caller instead of relying on the fallback.)"""
    divs = [d for d in range(8, N + 1, 8) if N % d == 0]
    if not divs:
        return N
    multi = [d for d in divs if d <= tile_n and N // d >= 2]
    if multi:
        return max(multi)
    fit = [d for d in divs if d <= tile_n]
    return max(fit) if fit else min(divs)


def _vmem_estimate(tn, D_in, H, D_out, x_bytes, w_bytes, out_bytes):
    # Pipelined x/out blocks are double-buffered; assume 2x allocation even
    # for the constant-index (resident) weight/bias blocks (conservative).
    pipelined = 2 * tn * D_in * x_bytes + 2 * tn * D_out * out_bytes
    resident = 2 * (D_in * H * w_bytes + H * D_out * w_bytes + (H + D_out) * 4)
    return pipelined + resident


def two_layer_net(x, params, *, tile_n=1024):
    """y = linear2(relu(linear1(x))) with torch.nn.Linear semantics."""
    w1, b1, w2, b2 = params["w1"], params["b1"], params["w2"], params["b2"]

    N, D_in = x.shape
    H = w1.shape[1]
    D_out = w2.shape[1]

    tn = _row_tile(N, tile_n)
    grid = (N // tn,)

    x_bytes = x.dtype.itemsize
    w_bytes = w1.dtype.itemsize
    out_bytes = x.dtype.itemsize

    est = _vmem_estimate(tn, D_in, H, D_out, x_bytes, w_bytes, out_bytes)
    # Keep headroom, but never exceed 48 MiB (safe under v7x's 64 MiB VMEM).
    vmem_limit = min(48 * MIB, max(32 * MIB, int(1.5 * est)))

    cost = pl.CostEstimate(
        flops=2 * N * (D_in * H + H * D_out),
        transcendentals=0,
        bytes_accessed=(N * D_in * x_bytes + D_in * H * w_bytes
                        + H * D_out * w_bytes + (H + D_out) * 4
                        + N * D_out * out_bytes),
    )

    def resident(shape):
        # Constant block index -> loaded once, stays VMEM-resident across grid.
        return pl.BlockSpec(shape, lambda i: (0,) * len(shape))

    return pl.pallas_call(
        mlp_kernel,
        out_shape=jax.ShapeDtypeStruct((N, D_out), x.dtype),
        grid=grid,
        in_specs=[
            pl.BlockSpec((tn, D_in), lambda i: (i, 0)),   # x: row-tiled, pipelined
            resident((D_in, H)),                          # W1 [K, N] bf16
            resident((1, H)),                             # b1 f32
            resident((H, D_out)),                         # W2 [K, N] bf16
            resident((1, D_out)),                         # b2 f32
        ],
        out_specs=pl.BlockSpec((tn, D_out), lambda i: (i, 0)),
        compiler_params=pltpu.CompilerParams(
            dimension_semantics=("parallel",),            # shards rows across v7x's 2 TCs
            vmem_limit_bytes=vmem_limit),
        cost_estimate=cost,
    )(x, w1, b1, w2, b2)


if __name__ == "__main__":
    # TwoLayerNet(D_in, H, D_out); batch sized to exercise a 2-step row grid.
    N, D_in, H, D_out = 256, 64, 128, 32

    key = jax.random.PRNGKey(0)
    kx, kw1, kb1, kw2, kb2 = jax.random.split(key, 5)

    x = jax.random.normal(kx, (N, D_in), dtype=jnp.float32)
    # torch.nn.Linear weights are [out_features, in_features]
    w1 = jax.random.normal(kw1, (H, D_in), dtype=jnp.float32) * 0.1
    b1 = jax.random.normal(kb1, (H,), dtype=jnp.float32) * 0.1
    w2 = jax.random.normal(kw2, (D_out, H), dtype=jnp.float32) * 0.1
    b2 = jax.random.normal(kb2, (D_out,), dtype=jnp.float32) * 0.1

    params = prepare_params(w1, b1, w2, b2)       # one-time prep, not per call
    y = two_layer_net(x, params)
    y = jax.block_until_ready(y)

    # Pure-JAX f32 reference (matches the PyTorch forward semantics).
    h_ref = jnp.maximum(x @ w1.T + b1, 0.0)
    y_ref = h_ref @ w2.T + b2

    assert y.shape == (N, D_out)
    # bf16 MXU operands with f32 accumulation -> loosened tolerance.
    assert jnp.allclose(y, y_ref, atol=5e-2, rtol=5e-2), \
        float(jnp.max(jnp.abs(y - y_ref)))
    print("KERNEL_OK")
</pallas_src>

<mosaic_0001>
module attributes {stable_mosaic.version = 11 : i64} {
  func.func @mlp_kernel(%arg0: i32, %arg1: memref<128x64xf32, #tpu.memory_space<vmem>>, %arg2: memref<64x128xbf16, #tpu.memory_space<vmem>>, %arg3: memref<1x128xf32, #tpu.memory_space<vmem>>, %arg4: memref<128x32xbf16, #tpu.memory_space<vmem>>, %arg5: memref<1x32xf32, #tpu.memory_space<vmem>>, %arg6: memref<128x32xf32, #tpu.memory_space<vmem>>) attributes {dimension_semantics = [#tpu.dimension_semantics<parallel>], iteration_bounds = array<i64: 2>, scalar_prefetch = 0 : i64, scratch_operands = 0 : i64, tpu.core_type = #tpu.core_type<tc>, window_params = [{transform_indices = @transform_0, window_bounds = array<i64: 128, 64>}, {pipeline_mode = #tpu.pipeline_mode<synchronous>, transform_indices = @transform_1, window_bounds = array<i64: 64, 128>}, {pipeline_mode = #tpu.pipeline_mode<synchronous>, transform_indices = @transform_2, window_bounds = array<i64: 1, 128>}, {pipeline_mode = #tpu.pipeline_mode<synchronous>, transform_indices = @transform_3, window_bounds = array<i64: 128, 32>}, {pipeline_mode = #tpu.pipeline_mode<synchronous>, transform_indices = @transform_4, window_bounds = array<i64: 1, 32>}, {transform_indices = @transform_5, window_bounds = array<i64: 128, 32>}]} {
    %c0 = arith.constant 0 : index
    %c0_0 = arith.constant 0 : index
    %0 = vector.load %arg1[%c0, %c0_0] : memref<128x64xf32, #tpu.memory_space<vmem>>, vector<128x64xf32>
    %1 = arith.truncf %0 : vector<128x64xf32> to vector<128x64xbf16>
    %c0_1 = arith.constant 0 : index
    %c0_2 = arith.constant 0 : index
    %2 = vector.load %arg2[%c0_1, %c0_2] : memref<64x128xbf16, #tpu.memory_space<vmem>>, vector<64x128xbf16>
    %cst = arith.constant dense<0.000000e+00> : vector<128x128xf32>
    %3 = tpu.matmul %1, %2, %cst {dimension_numbers = #tpu.dot_dimension_numbers<[1], [0], [0], [1], [0, 0, 1, 1], [], []>} : vector<128x64xbf16>, vector<64x128xbf16>, vector<128x128xf32> -> vector<128x128xf32>
    %c0_3 = arith.constant 0 : index
    %c0_4 = arith.constant 0 : index
    %4 = vector.load %arg3[%c0_3, %c0_4] : memref<1x128xf32, #tpu.memory_space<vmem>>, vector<1x128xf32>
    %5 = vector.broadcast %4 : vector<1x128xf32> to vector<128x128xf32>
    %6 = arith.addf %3, %5 : vector<128x128xf32>
    %cst_5 = arith.constant 0.000000e+00 : f32
    %7 = vector.broadcast %cst_5 : f32 to vector<128x128xf32>
    %8 = arith.maximumf %6, %7 : vector<128x128xf32>
    %9 = arith.truncf %8 : vector<128x128xf32> to vector<128x128xbf16>
    %c0_6 = arith.constant 0 : index
    %c0_7 = arith.constant 0 : index
    %10 = vector.load %arg4[%c0_6, %c0_7] : memref<128x32xbf16, #tpu.memory_space<vmem>>, vector<128x32xbf16>
    %cst_8 = arith.constant dense<0.000000e+00> : vector<128x32xf32>
    %11 = tpu.matmul %9, %10, %cst_8 {dimension_numbers = #tpu.dot_dimension_numbers<[1], [0], [0], [1], [0, 0, 1, 1], [], []>} : vector<128x128xbf16>, vector<128x32xbf16>, vector<128x32xf32> -> vector<128x32xf32>
    %c0_9 = arith.constant 0 : index
    %c0_10 = arith.constant 0 : index
    %12 = vector.load %arg5[%c0_9, %c0_10] : memref<1x32xf32, #tpu.memory_space<vmem>>, vector<1x32xf32>
    %13 = vector.broadcast %12 : vector<1x32xf32> to vector<128x32xf32>
    %14 = arith.addf %11, %13 : vector<128x32xf32>
    %c0_11 = arith.constant 0 : index
    %c0_12 = arith.constant 0 : index
    %15 = vector.load %arg6[%c0_11, %c0_12] : memref<128x32xf32, #tpu.memory_space<vmem>>, vector<128x32xf32>
    tpu.vector_store %arg6[%c0_11, %c0_12], %14 {strides = array<i32>} : memref<128x32xf32, #tpu.memory_space<vmem>>, vector<128x32xf32>,
    return
  }
  func.func @transform_0(%arg0: i32) -> (i32, i32) {
    %c0_i32 = arith.constant 0 : i32
    %c0_i32_0 = arith.constant 0 : i32
    return %arg0, %c0_i32 : i32, i32
  }
  func.func @transform_1(%arg0: i32) -> (i32, i32) {
    %c0_i32 = arith.constant 0 : i32
    %c0_i32_0 = arith.constant 0 : i32
    %c0_i32_1 = arith.constant 0 : i32
    return %c0_i32, %c0_i32_0 : i32, i32
  }
  func.func @transform_2(%arg0: i32) -> (i32, i32) {
    %c0_i32 = arith.constant 0 : i32
    %c0_i32_0 = arith.constant 0 : i32
    %c0_i32_1 = arith.constant 0 : i32
    return %c0_i32, %c0_i32_0 : i32, i32
  }
  func.func @transform_3(%arg0: i32) -> (i32, i32) {
    %c0_i32 = arith.constant 0 : i32
    %c0_i32_0 = arith.constant 0 : i32
    %c0_i32_1 = arith.constant 0 : i32
    return %c0_i32, %c0_i32_0 : i32, i32
  }
  func.func @transform_4(%arg0: i32) -> (i32, i32) {
    %c0_i32 = arith.constant 0 : i32
    %c0_i32_0 = arith.constant 0 : i32
    %c0_i32_1 = arith.constant 0 : i32
    return %c0_i32, %c0_i32_0 : i32, i32
  }
  func.func @transform_5(%arg0: i32) -> (i32, i32) {
    %c0_i32 = arith.constant 0 : i32
    %c0_i32_0 = arith.constant 0 : i32
    return %arg0, %c0_i32 : i32, i32
  }
}

</mosaic_0001>

<llo_original>
// kernel: tpu_custom_call.1
$region0: #{tpu_custom_call.1}
  #allocation0 [shape = 'u32[]', space=smem, size = 0x4, offset = 0x4, fixed_abs, tag = 'smem constant byte address 0x4 - core index']
  #allocation1 [shape = 'u32[144,128]{1,0:T(1,128)}', space=vmem, size = 0x12000, scoped, tag = 'internal scratch']
  %s0 = inlined_call_operand.vmem [shape: f32[256,64], index: 0, kind: input, shape index: {}]
  %s1 = inlined_call_operand.vmem [shape: bf16[64,128], index: 1, kind: input, shape index: {}]
  %s2 = inlined_call_operand.vmem [shape: f32[1,128], index: 2, kind: input, shape index: {}]
  %s3 = inlined_call_operand.vmem [shape: bf16[128,32], index: 3, kind: input, shape index: {}]
  %s4 = inlined_call_operand.vmem [shape: f32[1,32], index: 4, kind: input, shape index: {}]
  %s5 = inlined_call_operand.vmem [shape: f32[256,32], index: 5, kind: output, shape index: {}]
  %s6 = sld [smem:[#allocation0]]
  $region53: #{tpu_custom_call.1} parent=0
    _
  %s8 = ssub.s32 1, %s6
  %s9 = scalar_select 0, %s8, %s6
  loop: start=0, step=1, limit=4
  $region2: #{tpu_custom_call.1} parent=0 // loop_pre_header
    _
  $region3: #{tpu_custom_call.1} parent=0 // loop_header
    %s11 = sphi 0, %s15
    %p12 = scmp.ge.s32.totalorder %s11, 4
    %s21 = sphi 0, %s23
    %s24 = sphi 0, %s21
    %s25 = sphi 0, %s24
    %s41 = sphi 0, %s25
    %s45 = sphi 0, %s45
    %s47 = sphi 0, %s45
    %s48 = sphi 0, %s47
    %s62 = sphi 0, %s48
    %s66 = sphi 0, %s66
    %s68 = sphi 0, %s66
    %s69 = sphi 0, %s68
    %s83 = sphi 0, %s69
    %s87 = sphi 0, %s87
    %s89 = sphi 0, %s87
    %s90 = sphi 0, %s89
    %s104 = sphi 0, %s90
    %s108 = sphi 0, %s108
    %s110 = sphi 0, %s108
    %s111 = sphi 0, %s110
    %s125 = sphi 0, %s111
    %s131 = sphi 0, %s133
    %s134 = sphi 0, %s131
    %s135 = sphi 0, %s134
    %s151 = sphi 0, %s135
  $region4: #{tpu_custom_call.1} parent=0 // loop_header_branch
    %14 = sbr.rel (%p12) target = $region8
  $region5: #{tpu_custom_call.1} parent=0 // loop_body
    %s16 = ssub.s32 %s11, 1
    %s17 = ssub.s32 %s11, 2
    %s18 = sadd.s32 %s11, 1
    %s19 = ssub.s32 %s11, %s18
    %p20 = scmp.eq.s32.totalorder %s19, 0
    %s22 = sadd.s32 %s21, 1
    %s23 = scalar_select %p20, %s21, %s22
    %p26 = pneg %p20
    %p27 = scmp.eq.s32.totalorder %s11, 1
    %p28 = por %p26, %p27
    %p29 = scmp.ne.s32.totalorder %s21, %s24
    %p30 = scmp.eq.s32.totalorder %s11, 0
    %p31 = por %p29, %p30
    %p32 = scmp.ne.s32.totalorder %s21, %s24
    %p33 = scmp.eq.s32.totalorder %s16, 1
    %p34 = por %p32, %p33
    %p35 = scmp.ne.s32.totalorder %s24, %s25
    %p36 = scmp.eq.s32.totalorder %s16, 0
    %p37 = por %p35, %p36
    %p38 = scmp.ne.s32.totalorder %s24, %s25
    %p39 = scmp.eq.s32.totalorder %s17, 1
    %p40 = por %p38, %p39
    %p42 = scmp.ne.s32.totalorder %s25, %s41
    %p43 = scmp.eq.s32.totalorder %s17, 0
    %p44 = por %p42, %p43
    %s46 = sadd.s32 %s45, 1
    %p49 = scmp.eq.s32.totalorder %s11, 1
    %p50 = scmp.ne.s32.totalorder %s45, %s47
    %p51 = scmp.eq.s32.totalorder %s11, 0
    %p52 = por %p50, %p51
    %p53 = scmp.ne.s32.totalorder %s45, %s47
    %p54 = scmp.eq.s32.totalorder %s16, 1
    %p55 = por %p53, %p54
    %p56 = scmp.ne.s32.totalorder %s47, %s48
    %p57 = scmp.eq.s32.totalorder %s16, 0
    %p58 = por %p56, %p57
    %p59 = scmp.ne.s32.totalorder %s47, %s48
    %p60 = scmp.eq.s32.totalorder %s17, 1
    %p61 = por %p59, %p60
    %p63 = scmp.ne.s32.totalorder %s48, %s62
    %p64 = scmp.eq.s32.totalorder %s17, 0
    %p65 = por %p63, %p64
    %s67 = sadd.s32 %s66, 1
    %p70 = scmp.eq.s32.totalorder %s11, 1
    %p71 = scmp.ne.s32.totalorder %s66, %s68
    %p72 = scmp.eq.s32.totalorder %s11, 0
    %p73 = por %p71, %p72
    %p74 = scmp.ne.s32.totalorder %s66, %s68
    %p75 = scmp.eq.s32.totalorder %s16, 1
    %p76 = por %p74, %p75
    %p77 = scmp.ne.s32.totalorder %s68, %s69
    %p78 = scmp.eq.s32.totalorder %s16, 0
    %p79 = por %p77, %p78
    %p80 = scmp.ne.s32.totalorder %s68, %s69
    %p81 = scmp.eq.s32.totalorder %s17, 1
    %p82 = por %p80, %p81
    %p84 = scmp.ne.s32.totalorder %s69, %s83
    %p85 = scmp.eq.s32.totalorder %s17, 0
    %p86 = por %p84, %p85
    %s88 = sadd.s32 %s87, 1
    %p91 = scmp.eq.s32.totalorder %s11, 1
    %p92 = scmp.ne.s32.totalorder %s87, %s89
    %p93 = scmp.eq.s32.totalorder %s11, 0
    %p94 = por %p92, %p93
    %p95 = scmp.ne.s32.totalorder %s87, %s89
    %p96 = scmp.eq.s32.totalorder %s16, 1
    %p97 = por %p95, %p96
    %p98 = scmp.ne.s32.totalorder %s89, %s90
    %p99 = scmp.eq.s32.totalorder %s16, 0
    %p100 = por %p98, %p99
    %p101 = scmp.ne.s32.totalorder %s89, %s90
    %p102 = scmp.eq.s32.totalorder %s17, 1
    %p103 = por %p101, %p102
    %p105 = scmp.ne.s32.totalorder %s90, %s104
    %p106 = scmp.eq.s32.totalorder %s17, 0
    %p107 = por %p105, %p106
    %s109 = sadd.s32 %s108, 1
    %p112 = scmp.eq.s32.totalorder %s11, 1
    %p113 = scmp.ne.s32.totalorder %s108, %s110
    %p114 = scmp.eq.s32.totalorder %s11, 0
    %p115 = por %p113, %p114
    %p116 = scmp.ne.s32.totalorder %s108, %s110
    %p117 = scmp.eq.s32.totalorder %s16, 1
    %p118 = por %p116, %p117
    %p119 = scmp.ne.s32.totalorder %s110, %s111
    %p120 = scmp.eq.s32.totalorder %s16, 0
    %p121 = por %p119, %p120
    %p122 = scmp.ne.s32.totalorder %s110, %s111
    %p123 = scmp.eq.s32.totalorder %s17, 1
    %p124 = por %p122, %p123
    %p126 = scmp.ne.s32.totalorder %s111, %s125
    %p127 = scmp.eq.s32.totalorder %s17, 0
    %p128 = por %p126, %p127
    %s129 = ssub.s32 %s11, %s18
    %p130 = scmp.eq.s32.totalorder %s129, 0
    %s132 = sadd.s32 %s131, 1
    %s133 = scalar_select %p130, %s131, %s132
    %p136 = pneg %p130
    %p137 = scmp.eq.s32.totalorder %s11, 1
    %p138 = por %p136, %p137
    %p139 = scmp.ne.s32.totalorder %s131, %s134
    %p140 = scmp.eq.s32.totalorder %s11, 0
    %p141 = por %p139, %p140
    %p142 = scmp.ne.s32.totalorder %s131, %s134
    %p143 = scmp.eq.s32.totalorder %s16, 1
    %p144 = por %p142, %p143
    %p145 = scmp.ne.s32.totalorder %s134, %s135
    %p146 = scmp.eq.s32.totalorder %s16, 0
    %p147 = por %p145, %p146
    %p148 = scmp.ne.s32.totalorder %s134, %s135
    %p149 = scmp.eq.s32.totalorder %s17, 1
    %p150 = por %p148, %p149
    %p152 = scmp.ne.s32.totalorder %s135, %s151
    %p153 = scmp.eq.s32.totalorder %s17, 0
    %p154 = por %p152, %p153
    %p155 = scmp.le.s32.totalorder 1, %s11
    %p156 = scmp.lt.s32.totalorder %s11, 3
    %p157 = pnand %p155, %p156
    %p158 = pneg %p157
    // Predicated region
    $region9: #{tpu_custom_call.1} parent=5 // pred_check
      _
    $region10: #{tpu_custom_call.1} parent=5 // pred_check_branch
      %160 = sbr.rel (%p157) target = $region12
    $region11: #{tpu_custom_call.1} parent=5 // pred_region
      %s161 = ssub.s32 %s11, 1
      // Predicated region
      $region13: #{tpu_custom_call.1} parent=11 // pred_check
        %p162 = pneg %p58
      $region14: #{tpu_custom_call.1} parent=11 // pred_check_branch
        %164 = sbr.rel (%p162) target = $region16
      $region15: #{tpu_custom_call.1} parent=11 // pred_region
        _
      $region16: #{tpu_custom_call.1} parent=11 // pred_fallthru
        _
      // Predicated region
      $region17: #{tpu_custom_call.1} parent=11 // pred_check
        %p165 = pneg %p79
      $region18: #{tpu_custom_call.1} parent=11 // pred_check_branch
        %167 = sbr.rel (%p165) target = $region20
      $region19: #{tpu_custom_call.1} parent=11 // pred_region
        _
      $region20: #{tpu_custom_call.1} parent=11 // pred_fallthru
        _
      // Predicated region
      $region21: #{tpu_custom_call.1} parent=11 // pred_check
        %p168 = pneg %p100
      $region22: #{tpu_custom_call.1} parent=11 // pred_check_branch
        %170 = sbr.rel (%p168) target = $region24
      $region23: #{tpu_custom_call.1} parent=11 // pred_region
        _
      $region24: #{tpu_custom_call.1} parent=11 // pred_fallthru
        _
      // Predicated region
      $region25: #{tpu_custom_call.1} parent=11 // pred_check
        %p171 = pneg %p121
      $region26: #{tpu_custom_call.1} parent=11 // pred_check_branch
        %173 = sbr.rel (%p171) target = $region28
      $region27: #{tpu_custom_call.1} parent=11 // pred_region
        _
      $region28: #{tpu_custom_call.1} parent=11 // pred_fallthru
        _
    $region12: #{tpu_custom_call.1} parent=5 // pred_fallthru
      _
    %p174 = scmp.lt.s32.totalorder %s11, 2
    // Predicated region
    $region29: #{tpu_custom_call.1} parent=5 // pred_check
      %p175 = pneg %p174
    $region30: #{tpu_custom_call.1} parent=5 // pred_check_branch
      %177 = sbr.rel (%p175) target = $region32
    $region31: #{tpu_custom_call.1} parent=5 // pred_region
      // Predicated region
      $region33: #{tpu_custom_call.1} parent=31 // pred_check
        %p178 = pneg %p31
      $region34: #{tpu_custom_call.1} parent=31 // pred_check_branch
        %180 = sbr.rel (%p178) target = $region36
      $region35: #{tpu_custom_call.1} parent=31 // pred_region
        %s181 = smul.u32 16, %s11
        %p182 = scmp.lt.s32.totalorder %s181, 31
        %s183 = scalar_select %p182, %s181, 31
        %s184 = smul.addr %s183, 8
        %s185 = scalar_lea.vmem %s0, %s184
        %s186 = smul.u32 16, %s11
      $region36: #{tpu_custom_call.1} parent=31 // pred_fallthru
        _
    $region32: #{tpu_custom_call.1} parent=5 // pred_fallthru
      _
    %p187 = scmp.le.s32.totalorder 1, %s11
    %p188 = scmp.lt.s32.totalorder %s11, 3
    %p189 = pnand %p187, %p188
    %p190 = pneg %p189
    // Predicated region
    $region37: #{tpu_custom_call.1} parent=5 // pred_check
      _
    $region38: #{tpu_custom_call.1} parent=5 // pred_check_branch
      %192 = sbr.rel (%p189) target = $region40
    $region39: #{tpu_custom_call.1} parent=5 // pred_region
      %s193 = ssub.s32 %s11, 1
      %s194 = smul.u32 16, %s16
      %p195 = scmp.lt.s32.totalorder %s194, 31
      %s196 = scalar_select %p195, %s194, 31
      %s197 = smul.addr %s196, 8
      %s198 = scalar_lea.vmem %s0, %s197
      %p199 = pneg %p37
      %p200 = pneg %p34
      %p201 = pneg %p58
      %p202 = pneg %p55
      %p203 = pneg %p79
      %p204 = pneg %p76
      %p205 = pneg %p100
      %p206 = pneg %p97
      %p207 = pneg %p121
      %p208 = pneg %p118
      %p209 = pneg %p147
      %p210 = pneg %p144
      %s211 = smul.u32 16, %s16
      %p212 = scmp.lt.s32.totalorder %s211, 31
      %s213 = scalar_select %p212, %s211, 31
      %s214 = smul.addr %s213, 8
      %s215 = scalar_lea.vmem %s5, %s214
      %s216 = smul.u32 16, %s16
      %p217 = scmp.lt.s32.totalorder %s216, 31
      %s218 = scalar_select %p217, %s216, 31
      %s219 = smul.addr %s218, 8
      %s220 = scalar_lea.vmem %s0, %s219
      %s221 = smul.u32 16, %s16
      %s222 = smul.u32 16, %s16
      %p223 = scmp.lt.s32.totalorder %s222, 31
      %s224 = scalar_select %p223, %s222, 31
      %s225 = smul.addr %s224, 8
      %s226 = scalar_lea.vmem %s5, %s225
      %s227 = smul.u32 16, %s16
      %v229 = vld [vmem:[%s220] sm:$0xff]
      %v230 = vld [vmem:[%s220 + $0x8] sm:$0xff]
      %v231 = vld [vmem:[%s220 + $0x10] sm:$0xff]
      %v232 = vld [vmem:[%s220 + $0x18] sm:$0xff]
      %v233 = vld [vmem:[%s220 + $0x20] sm:$0xff]
      %v234 = vld [vmem:[%s220 + $0x28] sm:$0xff]
      %v235 = vld [vmem:[%s220 + $0x30] sm:$0xff]
      %v236 = vld [vmem:[%s220 + $0x38] sm:$0xff]
      %v237 = vld [vmem:[%s220 + $0x40] sm:$0xff]
      %v238 = vld [vmem:[%s220 + $0x48] sm:$0xff]
      %v239 = vld [vmem:[%s220 + $0x50] sm:$0xff]
      %v240 = vld [vmem:[%s220 + $0x58] sm:$0xff]
      %v241 = vld [vmem:[%s220 + $0x60] sm:$0xff]
      %v242 = vld [vmem:[%s220 + $0x68] sm:$0xff]
      %v243 = vld [vmem:[%s220 + $0x70] sm:$0xff]
      %v244 = vld [vmem:[%s220 + $0x78] sm:$0xff]
      %v245 = vpack.c.bf16 %v230, %v229
      %v246 = vpack.c.bf16 %v232, %v231
      %v247 = vpack.c.bf16 %v234, %v233
      %v248 = vpack.c.bf16 %v236, %v235
      %v249 = vpack.c.bf16 %v238, %v237
      %v250 = vpack.c.bf16 %v240, %v239
      %v251 = vpack.c.bf16 %v242, %v241
      %v252 = vpack.c.bf16 %v244, %v243
      %v253 = vld [vmem:[%s1] sm:$0xf]
      %v254 = vld [vmem:[%s1 + $0x4] sm:$0xf]
      %v255 = vld [vmem:[%s1 + $0x8] sm:$0xf]
      %v256 = vld [vmem:[%s1 + $0xc] sm:$0xf]
      %v257 = vld [vmem:[%s1 + $0x10] sm:$0xf]
      %v258 = vld [vmem:[%s1 + $0x14] sm:$0xf]
      %v259 = vld [vmem:[%s1 + $0x18] sm:$0xf]
      %v260 = vld [vmem:[%s1 + $0x1c] sm:$0xf]
      %v261 = vld [vmem:[%s2] sm:$0x1]
      %v263 = vlaneseq
      %v264 = vshrl.u32 %v263, 7
      %v265 = vsub.s32 0, %v264
      %v266 = vrot.slane %v261, %v265
      %v276 = vunpack.c.l.b16 %v253
      %v277 = vunpack.c.l.b16 %v254
      %v278 = vunpack.c.l.b16 %v255
      %v279 = vunpack.c.l.b16 %v256
      %v280 = vunpack.c.l.b16 %v257
      %v281 = vunpack.c.l.b16 %v258
      %v282 = vunpack.c.l.b16 %v259
      %v283 = vunpack.c.l.b16 %v260
      %v284 = vpack.c.b16 %v277, %v276
      %v285 = vpack.c.b16 %v279, %v278
      %v286 = vpack.c.b16 %v281, %v280
      %v287 = vpack.c.b16 %v283, %v282
      %vm292 = vcmask 523264
      %v294 = vsel %vm292, %v245, 0
      %v297 = vsel %vm292, %v246, 0
      %v300 = vsel %vm292, %v247, 0
      %v303 = vsel %vm292, %v248, 0
      %v306 = vsel %vm292, %v249, 0
      %v309 = vsel %vm292, %v250, 0
      %v312 = vsel %vm292, %v251, 0
      %v315 = vsel %vm292, %v252, 0
      %317 = vmatprep.subr.bf16.mxu0 0
      %318 = vmatpush1.bf16.msra.mxu0 %v284
      %319 = vmatprep.subr.bf16.mxu0 0
      %320 = vmatpush1.bf16.msra.mxu0 %v285
      %321 = vmatprep.subr.bf16.mxu0 0
      %322 = vmatpush1.bf16.msra.mxu0 %v286
      %323 = vmatprep.subr.bf16.mxu0 0
      %324 = vmatpush1.bf16.msra.mxu0 %v287
      %325 = vmatprep.subr.bf16.mxu0 0
      %326 = vmatpush1.bf16.msra.mxu0 0
      %327 = vmatprep.subr.bf16.mxu0 0
      %328 = vmatpush1.bf16.msra.mxu0 0
      %329 = vmatprep.subr.bf16.mxu0 0
      %330 = vmatpush1.bf16.msra.mxu0 0
      %331 = vmatprep.subr.bf16.mxu0 0
      %332 = vmatpush1.bf16.msra.mxu0 0
      %333 = vmatprep.subr.bf16.mxu0 0
      %334 = vmatpush1.bf16.msra.mxu0 0
      %335 = vmatprep.subr.bf16.mxu0 0
      %336 = vmatpush1.bf16.msra.mxu0 0
      %337 = vmatprep.subr.bf16.mxu0 0
      %338 = vmatpush1.bf16.msra.mxu0 0
      %339 = vmatprep.subr.bf16.mxu0 0
      %340 = vmatpush1.bf16.msra.mxu0 0
      %341 = vmatprep.subr.bf16.mxu0 0
      %342 = vmatpush1.bf16.msra.mxu0 0
      %343 = vmatprep.subr.bf16.mxu0 0
      %344 = vmatpush1.bf16.msra.mxu0 0
      %345 = vmatprep.subr.bf16.mxu0 0
      %346 = vmatpush1.bf16.msra.mxu0 0
      %347 = vmatprep.subr.bf16.mxu0 0
      %348 = vmatpush1.bf16.msra.mxu0 0
      %349 = vmatprep.mubr.bf16.mxu0 0
      %350 = vmatmul.mubr.bf16.gmra.mrb[0].mxu0 %v294
      %v351 = vpop.f32.mrb[0].mxu0
      %v352 = vadd.f32 %v266, %v351
      %v353 = vpop.f32.mrb[0].mxu0
      %v354 = vpop.f32.mrb[0].mxu0
      %v355 = vadd.f32 %v266, %v354
      %v356 = vpop.f32.mrb[0].mxu0
      %357 = vmatprep.mubr.bf16.mxu0 0
      %358 = vmatmul.mubr.bf16.gmra.mrb[0].mxu0 %v297
      %v359 = vpop.f32.mrb[0].mxu0
      %v360 = vadd.f32 %v266, %v359
      %v361 = vpop.f32.mrb[0].mxu0
      %v362 = vpop.f32.mrb[0].mxu0
      %v363 = vadd.f32 %v266, %v362
      %v364 = vpop.f32.mrb[0].mxu0
      %365 = vmatprep.mubr.bf16.mxu0 0
      %366 = vmatmul.mubr.bf16.gmra.mrb[0].mxu0 %v300
      %v367 = vpop.f32.mrb[0].mxu0
      %v368 = vadd.f32 %v266, %v367
      %v369 = vpop.f32.mrb[0].mxu0
      %v370 = vpop.f32.mrb[0].mxu0
      %v371 = vadd.f32 %v266, %v370
      %v372 = vpop.f32.mrb[0].mxu0
      %373 = vmatprep.mubr.bf16.mxu0 0
      %374 = vmatmul.mubr.bf16.gmra.mrb[0].mxu0 %v303
      %v375 = vpop.f32.mrb[0].mxu0
      %v376 = vadd.f32 %v266, %v375
      %v377 = vpop.f32.mrb[0].mxu0
      %v378 = vpop.f32.mrb[0].mxu0
      %v379 = vadd.f32 %v266, %v378
      %v380 = vpop.f32.mrb[0].mxu0
      %381 = vmatprep.mubr.bf16.mxu0 0
      %382 = vmatmul.mubr.bf16.gmra.mrb[0].mxu0 %v306
      %v383 = vpop.f32.mrb[0].mxu0
      %v384 = vadd.f32 %v266, %v383
      %v385 = vpop.f32.mrb[0].mxu0
      %v386 = vpop.f32.mrb[0].mxu0
      %v387 = vadd.f32 %v266, %v386
      %v388 = vpop.f32.mrb[0].mxu0
      %389 = vmatprep.mubr.bf16.mxu0 0
      %390 = vmatmul.mubr.bf16.gmra.mrb[0].mxu0 %v309
      %v391 = vpop.f32.mrb[0].mxu0
      %v392 = vadd.f32 %v266, %v391
      %v393 = vpop.f32.mrb[0].mxu0
      %v394 = vpop.f32.mrb[0].mxu0
      %v395 = vadd.f32 %v266, %v394
      %v396 = vpop.f32.mrb[0].mxu0
      %397 = vmatprep.mubr.bf16.mxu0 0
      %398 = vmatmul.mubr.bf16.gmra.mrb[0].mxu0 %v312
      %v399 = vpop.f32.mrb[0].mxu0
      %v400 = vadd.f32 %v266, %v399
      %v401 = vpop.f32.mrb[0].mxu0
      %v402 = vpop.f32.mrb[0].mxu0
      %v403 = vadd.f32 %v266, %v402
      %v404 = vpop.f32.mrb[0].mxu0
      %405 = vmatprep.mubr.bf16.mxu0 0
      %406 = vmatmul.mubr.bf16.gmra.mrb[0].mxu0 %v315
      %v407 = vpop.f32.mrb[0].mxu0
      %v408 = vadd.f32 %v266, %v407
      %v409 = vpop.f32.mrb[0].mxu0
      %v410 = vpop.f32.mrb[0].mxu0
      %v411 = vadd.f32 %v266, %v410
      %v412 = vpop.f32.mrb[0].mxu0
      %413 = vdwg.mxu0
      %v414 = vmax.f32 %v352, 0.0
      %v415 = vmax.f32 %v355, 0.0
      %v416 = vmax.f32 %v360, 0.0
      %v417 = vmax.f32 %v363, 0.0
      %v418 = vmax.f32 %v368, 0.0
      %v419 = vmax.f32 %v371, 0.0
      %v420 = vmax.f32 %v376, 0.0
      %v421 = vmax.f32 %v379, 0.0
      %v422 = vmax.f32 %v384, 0.0
      %v423 = vmax.f32 %v387, 0.0
      %v424 = vmax.f32 %v392, 0.0
      %v425 = vmax.f32 %v395, 0.0
      %v426 = vmax.f32 %v400, 0.0
      %v427 = vmax.f32 %v403, 0.0
      %v428 = vmax.f32 %v408, 0.0
      %v429 = vmax.f32 %v411, 0.0
      %v430 = vpack.c.bf16 %v415, %v414
      %v431 = vpack.c.bf16 %v417, %v416
      %v432 = vpack.c.bf16 %v419, %v418
      %v433 = vpack.c.bf16 %v421, %v420
      %v434 = vpack.c.bf16 %v423, %v422
      %v435 = vpack.c.bf16 %v425, %v424
      %v436 = vpack.c.bf16 %v427, %v426
      %v437 = vpack.c.bf16 %v429, %v428
      %v438 = vld [vmem:[%s3] sm:$0xf]
      %v439 = vld [vmem:[%s3 + $0x4] sm:$0xf]
      %v440 = vld [vmem:[%s3 + $0x8] sm:$0xf]
      %v441 = vld [vmem:[%s3 + $0xc] sm:$0xf]
      %v442 = vld [vmem:[%s3 + $0x10] sm:$0xf]
      %v443 = vld [vmem:[%s3 + $0x14] sm:$0xf]
      %v444 = vld [vmem:[%s3 + $0x18] sm:$0xf]
      %v445 = vld [vmem:[%s3 + $0x1c] sm:$0xf]
      %v446 = vld [vmem:[%s3 + $0x20] sm:$0xf]
      %v447 = vld [vmem:[%s3 + $0x24] sm:$0xf]
      %v448 = vld [vmem:[%s3 + $0x28] sm:$0xf]
      %v449 = vld [vmem:[%s3 + $0x2c] sm:$0xf]
      %v450 = vld [vmem:[%s3 + $0x30] sm:$0xf]
      %v451 = vld [vmem:[%s3 + $0x34] sm:$0xf]
      %v452 = vld [vmem:[%s3 + $0x38] sm:$0xf]
      %v453 = vld [vmem:[%s3 + $0x3c] sm:$0xf]
      %v454 = vld [vmem:[%s4] sm:$0x1]
      %v456 = vlaneseq
      %v457 = vshrl.u32 %v456, 7
      %v458 = vsub.s32 0, %v457
      %v459 = vrot.slane %v454, %v458
      %v477 = vunpack.c.l.b16 %v438
      %v478 = vunpack.c.l.b16 %v439
      %v479 = vunpack.c.l.b16 %v440
      %v480 = vunpack.c.l.b16 %v441
      %v481 = vunpack.c.l.b16 %v442
      %v482 = vunpack.c.l.b16 %v443
      %v483 = vunpack.c.l.b16 %v444
      %v484 = vunpack.c.l.b16 %v445
      %v485 = vunpack.c.l.b16 %v446
      %v486 = vunpack.c.l.b16 %v447
      %v487 = vunpack.c.l.b16 %v448
      %v488 = vunpack.c.l.b16 %v449
      %v489 = vunpack.c.l.b16 %v450
      %v490 = vunpack.c.l.b16 %v451
      %v491 = vunpack.c.l.b16 %v452
      %v492 = vunpack.c.l.b16 %v453
      %v493 = vpack.c.b16 %v478, %v477
      %v494 = vpack.c.b16 %v480, %v479
      %v495 = vpack.c.b16 %v482, %v481
      %v496 = vpack.c.b16 %v484, %v483
      %v497 = vpack.c.b16 %v486, %v485
      %v498 = vpack.c.b16 %v488, %v487
      %v499 = vpack.c.b16 %v490, %v489
      %v500 = vpack.c.b16 %v492, %v491
      %509 = vmatprep.subr.bf16.mxu0 0
      %510 = vmatpush1.bf16.msra.mxu0 %v493
      %511 = vmatprep.subr.bf16.mxu0 0
      %512 = vmatpush1.bf16.msra.mxu0 %v494
      %513 = vmatprep.subr.bf16.mxu0 0
      %514 = vmatpush1.bf16.msra.mxu0 %v495
      %515 = vmatprep.subr.bf16.mxu0 0
      %516 = vmatpush1.bf16.msra.mxu0 %v496
      %517 = vmatprep.subr.bf16.mxu0 0
      %518 = vmatpush1.bf16.msra.mxu0 %v497
      %519 = vmatprep.subr.bf16.mxu0 0
      %520 = vmatpush1.bf16.msra.mxu0 %v498
      %521 = vmatprep.subr.bf16.mxu0 0
      %522 = vmatpush1.bf16.msra.mxu0 %v499
      %523 = vmatprep.subr.bf16.mxu0 0
      %524 = vmatpush1.bf16.msra.mxu0 %v500
      %525 = vmatprep.subr.bf16.mxu0 0
      %526 = vmatpush1.bf16.msra.mxu0 0
      %527 = vmatprep.subr.bf16.mxu0 0
      %528 = vmatpush1.bf16.msra.mxu0 0
      %529 = vmatprep.subr.bf16.mxu0 0
      %530 = vmatpush1.bf16.msra.mxu0 0
      %531 = vmatprep.subr.bf16.mxu0 0
      %532 = vmatpush1.bf16.msra.mxu0 0
      %533 = vmatprep.subr.bf16.mxu0 0
      %534 = vmatpush1.bf16.msra.mxu0 0
      %535 = vmatprep.subr.bf16.mxu0 0
      %536 = vmatpush1.bf16.msra.mxu0 0
      %537 = vmatprep.subr.bf16.mxu0 0
      %538 = vmatpush1.bf16.msra.mxu0 0
      %539 = vmatprep.subr.bf16.mxu0 0
      %540 = vmatpush1.bf16.msra.mxu0 0
      %541 = vmatprep.mubr.bf16.mxu0 0
      %542 = vmatmul.mubr.bf16.gmra.mrb[0].mxu0 %v430
      %v543 = vpop.f32.mrb[0].mxu0
      %v544 = vadd.f32 %v459, %v543
      %v545 = vpop.f32.mrb[0].mxu0
      %v546 = vpop.f32.mrb[0].mxu0
      %v547 = vadd.f32 %v459, %v546
      %v548 = vpop.f32.mrb[0].mxu0
      %549 = vmatprep.mubr.bf16.mxu0 0
      %550 = vmatmul.mubr.bf16.gmra.mrb[0].mxu0 %v431
      %v551 = vpop.f32.mrb[0].mxu0
      %v552 = vadd.f32 %v459, %v551
      %v553 = vpop.f32.mrb[0].mxu0
      %v554 = vpop.f32.mrb[0].mxu0
      %v555 = vadd.f32 %v459, %v554
      %v556 = vpop.f32.mrb[0].mxu0
      %557 = vmatprep.mubr.bf16.mxu0 0
      %558 = vmatmul.mubr.bf16.gmra.mrb[0].mxu0 %v432
      %v559 = vpop.f32.mrb[0].mxu0
      %v560 = vadd.f32 %v459, %v559
      %v561 = vpop.f32.mrb[0].mxu0
      %v562 = vpop.f32.mrb[0].mxu0
      %v563 = vadd.f32 %v459, %v562
      %v564 = vpop.f32.mrb[0].mxu0
      %565 = vmatprep.mubr.bf16.mxu0 0
      %566 = vmatmul.mubr.bf16.gmra.mrb[0].mxu0 %v433
      %v567 = vpop.f32.mrb[0].mxu0
      %v568 = vadd.f32 %v459, %v567
      %v569 = vpop.f32.mrb[0].mxu0
      %v570 = vpop.f32.mrb[0].mxu0
      %v571 = vadd.f32 %v459, %v570
      %v572 = vpop.f32.mrb[0].mxu0
      %573 = vmatprep.mubr.bf16.mxu0 0
      %574 = vmatmul.mubr.bf16.gmra.mrb[0].mxu0 %v434
      %v575 = vpop.f32.mrb[0].mxu0
      %v576 = vadd.f32 %v459, %v575
      %v577 = vpop.f32.mrb[0].mxu0
      %v578 = vpop.f32.mrb[0].mxu0
      %v579 = vadd.f32 %v459, %v578
      %v580 = vpop.f32.mrb[0].mxu0
      %581 = vmatprep.mubr.bf16.mxu0 0
      %582 = vmatmul.mubr.bf16.gmra.mrb[0].mxu0 %v435
      %v583 = vpop.f32.mrb[0].mxu0
      %v584 = vadd.f32 %v459, %v583
      %v585 = vpop.f32.mrb[0].mxu0
      %v586 = vpop.f32.mrb[0].mxu0
      %v587 = vadd.f32 %v459, %v586
      %v588 = vpop.f32.mrb[0].mxu0
      %589 = vmatprep.mubr.bf16.mxu0 0
      %590 = vmatmul.mubr.bf16.gmra.mrb[0].mxu0 %v436
      %v591 = vpop.f32.mrb[0].mxu0
      %v592 = vadd.f32 %v459, %v591
      %v593 = vpop.f32.mrb[0].mxu0
      %v594 = vpop.f32.mrb[0].mxu0
      %v595 = vadd.f32 %v459, %v594
      %v596 = vpop.f32.mrb[0].mxu0
      %597 = vmatprep.mubr.bf16.mxu0 0
      %598 = vmatmul.mubr.bf16.gmra.mrb[0].mxu0 %v437
      %v599 = vpop.f32.mrb[0].mxu0
      %v600 = vadd.f32 %v459, %v599
      %v601 = vpop.f32.mrb[0].mxu0
      %v602 = vpop.f32.mrb[0].mxu0
      %v603 = vadd.f32 %v459, %v602
      %v604 = vpop.f32.mrb[0].mxu0
      %605 = vdwg.mxu0
      %vm606 = vcmask 261120
      %607 = vst.msk [vmem:[%s226] sm:$0xff] %vm606, %v544
      %608 = vst.msk [vmem:[%s226 + $0x8] sm:$0xff] %vm606, %v547
      %609 = vst.msk [vmem:[%s226 + $0x10] sm:$0xff] %vm606, %v552
      %610 = vst.msk [vmem:[%s226 + $0x18] sm:$0xff] %vm606, %v555
      %611 = vst.msk [vmem:[%s226 + $0x20] sm:$0xff] %vm606, %v560
      %612 = vst.msk [vmem:[%s226 + $0x28] sm:$0xff] %vm606, %v563
      %613 = vst.msk [vmem:[%s226 + $0x30] sm:$0xff] %vm606, %v568
      %614 = vst.msk [vmem:[%s226 + $0x38] sm:$0xff] %vm606, %v571
      %615 = vst.msk [vmem:[%s226 + $0x40] sm:$0xff] %vm606, %v576
      %616 = vst.msk [vmem:[%s226 + $0x48] sm:$0xff] %vm606, %v579
      %617 = vst.msk [vmem:[%s226 + $0x50] sm:$0xff] %vm606, %v584
      %618 = vst.msk [vmem:[%s226 + $0x58] sm:$0xff] %vm606, %v587
      %619 = vst.msk [vmem:[%s226 + $0x60] sm:$0xff] %vm606, %v592
      %620 = vst.msk [vmem:[%s226 + $0x68] sm:$0xff] %vm606, %v595
      %621 = vst.msk [vmem:[%s226 + $0x70] sm:$0xff] %vm606, %v600
      %622 = vst.msk [vmem:[%s226 + $0x78] sm:$0xff] %vm606, %v603
      %s623 = smul.u32 16, %s16
      %p624 = scmp.lt.s32.totalorder %s623, 31
      %s625 = scalar_select %p624, %s623, 31
      %s626 = smul.addr %s625, 8
      %s627 = scalar_lea.vmem %s5, %s626
      // Predicated region
      $region41: #{tpu_custom_call.1} parent=39 // pred_check
        %p628 = pneg %p144
      $region42: #{tpu_custom_call.1} parent=39 // pred_check_branch
        %630 = sbr.rel (%p628) target = $region44
      $region43: #{tpu_custom_call.1} parent=39 // pred_region
        %s631 = smul.u32 16, %s16
      $region44: #{tpu_custom_call.1} parent=39 // pred_fallthru
        _
    $region40: #{tpu_custom_call.1} parent=5 // pred_fallthru
      _
    %p632 = scmp.le.s32.totalorder 2, %s11
    // Predicated region
    $region45: #{tpu_custom_call.1} parent=5 // pred_check
      %p633 = pneg %p632
    $region46: #{tpu_custom_call.1} parent=5 // pred_check_branch
      %635 = sbr.rel (%p633) target = $region48
    $region47: #{tpu_custom_call.1} parent=5 // pred_region
      %s636 = ssub.s32 %s11, 2
      // Predicated region
      $region49: #{tpu_custom_call.1} parent=47 // pred_check
        %p637 = pneg %p150
      $region50: #{tpu_custom_call.1} parent=47 // pred_check_branch
        %639 = sbr.rel (%p637) target = $region52
      $region51: #{tpu_custom_call.1} parent=47 // pred_region
        %s640 = smul.u32 16, %s17
        %p641 = scmp.lt.s32.totalorder %s640, 31
        %s642 = scalar_select %p641, %s640, 31
        %s643 = smul.addr %s642, 8
        %s644 = scalar_lea.vmem %s5, %s643
      $region52: #{tpu_custom_call.1} parent=47 // pred_fallthru
        _
    $region48: #{tpu_custom_call.1} parent=5 // pred_fallthru
      _
  $region6: #{tpu_custom_call.1} parent=0 // loop_footer
    %s15 = sadd.s32 1, %s11
  $region7: #{tpu_custom_call.1} parent=0 // loop_footer_branch
    %10 = sbr.rel target = $region3
  $region8: #{tpu_custom_call.1} parent=0 // loop_exit
    _

</llo_original>
